<compile_context>
chip_gen: v5e
topology: v5e:2x2
jax: 0.10.0
libtpu: 0.0.40
codegen_flags: <defaults>
</compile_context>

<pallas_src>
import functools

import jax
import jax.numpy as jnp
from jax.experimental import pallas as pl
from jax.experimental.pallas import tpu as pltpu


def qnet_kernel(x_ref, w1_ref, b1_ref, w2_ref, b2_ref, w3_ref, b3_ref, o_ref):
    """Fused 3-layer MLP: Linear -> Tanh -> Linear -> Tanh -> Linear."""
    x = x_ref[...]
    h1 = jnp.tanh(
        jnp.dot(x, w1_ref[...], preferred_element_type=jnp.float32) + b1_ref[...]
    )
    h2 = jnp.tanh(
        jnp.dot(h1, w2_ref[...], preferred_element_type=jnp.float32) + b2_ref[...]
    )
    o_ref[...] = (
        jnp.dot(h2, w3_ref[...], preferred_element_type=jnp.float32) + b3_ref[...]
    )


def _round_up(n, m):
    return ((n + m - 1) // m) * m


@functools.partial(jax.jit, static_argnames=("tb",))
def qnetwork_forward(x, params, *, tb=256):
    """Pallas forward pass of QNetwork. x: (B, state_dim) f32 -> (B, action_dim)."""
    w1, b1, w2, b2, w3, b3 = params
    B, state_dim = x.shape
    hidden = w1.shape[1]
    action_dim = w3.shape[1]

    # Batch tile: large enough to fill the MXU M dimension and amortize the
    # ~0.35us/step pipeline overhead, but don't over-pad tiny batches.
    # Keep it sublane-aligned (multiple of 8).
    tb_eff = min(tb, _round_up(B, 8))
    B_pad = _round_up(B, tb_eff)

    # Lane-dense output: pad the final layer's output columns to a multiple of
    # 128 so the output tile's last dim is full-lane (no masked vst.msk).
    n_pad = _round_up(action_dim, 128)

    x_p = x if B_pad == B else jnp.pad(x, ((0, B_pad - B), (0, 0)))
    if n_pad != action_dim:
        w3_p = jnp.pad(w3, ((0, 0), (0, n_pad - action_dim)))
        b3_p = jnp.pad(b3, ((0, 0), (0, n_pad - action_dim)))
    else:
        w3_p, b3_p = w3, b3

    grid = (B_pad // tb_eff,)
    # Batch is tiled over the grid; weights/biases are replicated to every step
    # (their block index is constant, so their DMA re-fires only once).
    in_specs = [
        pl.BlockSpec((tb_eff, state_dim), lambda i: (i, 0)),   # x
        pl.BlockSpec((state_dim, hidden), lambda i: (0, 0)),   # w1
        pl.BlockSpec((1, hidden), lambda i: (0, 0)),           # b1
        pl.BlockSpec((hidden, hidden), lambda i: (0, 0)),      # w2
        pl.BlockSpec((1, hidden), lambda i: (0, 0)),           # b2
        pl.BlockSpec((hidden, n_pad), lambda i: (0, 0)),       # w3 (lane-padded)
        pl.BlockSpec((1, n_pad), lambda i: (0, 0)),            # b3 (lane-padded)
    ]
    out_spec = pl.BlockSpec((tb_eff, n_pad), lambda i: (i, 0))

    out_padded = pl.pallas_call(
        qnet_kernel,
        out_shape=jax.ShapeDtypeStruct((B_pad, n_pad), jnp.float32),
        grid_spec=pltpu.PrefetchScalarGridSpec(
            num_scalar_prefetch=0,
            grid=grid,
            in_specs=in_specs,
            out_specs=out_spec,
        ),
        compiler_params=pltpu.CompilerParams(
            dimension_semantics=("parallel",)
        ),
    )(x_p, w1, b1, w2, b2, w3_p, b3_p)

    return out_padded[:B, :action_dim]


def init_qnetwork_params(key, state_dim, action_dim, hidden=128):
    """Deterministic init mirroring nn.Linear's U(-1/sqrt(fan_in), 1/sqrt(fan_in))."""
    def linear(k, fan_in, fan_out):
        kw, kb = jax.random.split(k)
        bound = 1.0 / jnp.sqrt(fan_in)
        w = jax.random.uniform(kw, (fan_in, fan_out), jnp.float32, -bound, bound)
        b = jax.random.uniform(kb, (1, fan_out), jnp.float32, -bound, bound)
        return w, b

    k1, k2, k3 = jax.random.split(key, 3)
    w1, b1 = linear(k1, state_dim, hidden)
    w2, b2 = linear(k2, hidden, hidden)
    w3, b3 = linear(k3, hidden, action_dim)
    return (w1, b1, w2, b2, w3, b3)


def qnetwork_ref(x, params):
    """Pure-JAX reference for correctness checking."""
    w1, b1, w2, b2, w3, b3 = params
    h1 = jnp.tanh(x @ w1 + b1)
    h2 = jnp.tanh(h1 @ w2 + b2)
    return h2 @ w3 + b3


if __name__ == "__main__":
    key = jax.random.PRNGKey(0)
    k_param, k_x1, k_x2 = jax.random.split(key, 3)

    state_dim = 4    # e.g. CartPole observation dim
    action_dim = 2   # e.g. CartPole action dim

    params = init_qnetwork_params(k_param, state_dim, action_dim)

    # Case 1: tiny batch (collapses to a single grid step, tb_eff = 8).
    x_small = jax.random.normal(k_x1, (8, state_dim), dtype=jnp.float32)
    out_small = jax.block_until_ready(qnetwork_forward(x_small, params))
    ref_small = qnetwork_ref(x_small, params)
    assert out_small.shape == (8, action_dim)
    assert jnp.allclose(out_small, ref_small, atol=1e-5, rtol=1e-5), "small-batch mismatch"

    # Case 2: non-multiple batch (padded to 512, grid=(2,), tb_eff = 256).
    x_big = jax.random.normal(k_x2, (300, state_dim), dtype=jnp.float32)
    out_big = jax.block_until_ready(qnetwork_forward(x_big, params))
    ref_big = qnetwork_ref(x_big, params)
    assert out_big.shape == (300, action_dim)
    assert jnp.allclose(out_big, ref_big, atol=1e-5, rtol=1e-5), "big-batch mismatch"

    print("KERNEL_OK")
</pallas_src>

<mosaic_0001>
module attributes {stable_mosaic.version = 11 : i64} {
  func.func @qnet_kernel(%arg0: i32, %arg1: memref<8x4xf32, #tpu.memory_space<vmem>>, %arg2: memref<4x128xf32, #tpu.memory_space<vmem>>, %arg3: memref<1x128xf32, #tpu.memory_space<vmem>>, %arg4: memref<128x128xf32, #tpu.memory_space<vmem>>, %arg5: memref<1x128xf32, #tpu.memory_space<vmem>>, %arg6: memref<128x128xf32, #tpu.memory_space<vmem>>, %arg7: memref<1x128xf32, #tpu.memory_space<vmem>>, %arg8: memref<8x128xf32, #tpu.memory_space<vmem>>) attributes {dimension_semantics = [#tpu.dimension_semantics<parallel>], iteration_bounds = array<i64: 1>, scalar_prefetch = 0 : i64, scratch_operands = 0 : i64, tpu.core_type = #tpu.core_type<tc>, window_params = [{transform_indices = @transform_0, window_bounds = array<i64: 8, 4>}, {pipeline_mode = #tpu.pipeline_mode<synchronous>, transform_indices = @transform_1, window_bounds = array<i64: 4, 128>}, {pipeline_mode = #tpu.pipeline_mode<synchronous>, transform_indices = @transform_2, window_bounds = array<i64: 1, 128>}, {pipeline_mode = #tpu.pipeline_mode<synchronous>, transform_indices = @transform_3, window_bounds = array<i64: 128, 128>}, {pipeline_mode = #tpu.pipeline_mode<synchronous>, transform_indices = @transform_4, window_bounds = array<i64: 1, 128>}, {pipeline_mode = #tpu.pipeline_mode<synchronous>, transform_indices = @transform_5, window_bounds = array<i64: 128, 128>}, {pipeline_mode = #tpu.pipeline_mode<synchronous>, transform_indices = @transform_6, window_bounds = array<i64: 1, 128>}, {transform_indices = @transform_7, window_bounds = array<i64: 8, 128>}]} {
    %c0 = arith.constant 0 : index
    %c0_0 = arith.constant 0 : index
    %0 = vector.load %arg1[%c0, %c0_0] : memref<8x4xf32, #tpu.memory_space<vmem>>, vector<8x4xf32>
    %c0_1 = arith.constant 0 : index
    %c0_2 = arith.constant 0 : index
    %1 = vector.load %arg2[%c0_1, %c0_2] : memref<4x128xf32, #tpu.memory_space<vmem>>, vector<4x128xf32>
    %cst = arith.constant dense<0.000000e+00> : vector<8x128xf32>
    %2 = tpu.matmul %0, %1, %cst {dimension_numbers = #tpu.dot_dimension_numbers<[1], [0], [0], [1], [0, 0, 1, 1], [], []>} : vector<8x4xf32>, vector<4x128xf32>, vector<8x128xf32> -> vector<8x128xf32>
    %c0_3 = arith.constant 0 : index
    %c0_4 = arith.constant 0 : index
    %3 = vector.load %arg3[%c0_3, %c0_4] : memref<1x128xf32, #tpu.memory_space<vmem>>, vector<1x128xf32>
    %4 = vector.broadcast %3 : vector<1x128xf32> to vector<8x128xf32>
    %5 = arith.addf %2, %4 : vector<8x128xf32>
    %6 = math.tanh %5 : vector<8x128xf32>
    %c0_5 = arith.constant 0 : index
    %c0_6 = arith.constant 0 : index
    %7 = vector.load %arg4[%c0_5, %c0_6] : memref<128x128xf32, #tpu.memory_space<vmem>>, vector<128x128xf32>
    %cst_7 = arith.constant dense<0.000000e+00> : vector<8x128xf32>
    %8 = tpu.matmul %6, %7, %cst_7 {dimension_numbers = #tpu.dot_dimension_numbers<[1], [0], [0], [1], [0, 0, 1, 1], [], []>} : vector<8x128xf32>, vector<128x128xf32>, vector<8x128xf32> -> vector<8x128xf32>
    %c0_8 = arith.constant 0 : index
    %c0_9 = arith.constant 0 : index
    %9 = vector.load %arg5[%c0_8, %c0_9] : memref<1x128xf32, #tpu.memory_space<vmem>>, vector<1x128xf32>
    %10 = vector.broadcast %9 : vector<1x128xf32> to vector<8x128xf32>
    %11 = arith.addf %8, %10 : vector<8x128xf32>
    %12 = math.tanh %11 : vector<8x128xf32>
    %c0_10 = arith.constant 0 : index
    %c0_11 = arith.constant 0 : index
    %13 = vector.load %arg6[%c0_10, %c0_11] : memref<128x128xf32, #tpu.memory_space<vmem>>, vector<128x128xf32>
    %cst_12 = arith.constant dense<0.000000e+00> : vector<8x128xf32>
    %14 = tpu.matmul %12, %13, %cst_12 {dimension_numbers = #tpu.dot_dimension_numbers<[1], [0], [0], [1], [0, 0, 1, 1], [], []>} : vector<8x128xf32>, vector<128x128xf32>, vector<8x128xf32> -> vector<8x128xf32>
    %c0_13 = arith.constant 0 : index
    %c0_14 = arith.constant 0 : index
    %15 = vector.load %arg7[%c0_13, %c0_14] : memref<1x128xf32, #tpu.memory_space<vmem>>, vector<1x128xf32>
    %16 = vector.broadcast %15 : vector<1x128xf32> to vector<8x128xf32>
    %17 = arith.addf %14, %16 : vector<8x128xf32>
    %c0_15 = arith.constant 0 : index
    %c0_16 = arith.constant 0 : index
    %18 = vector.load %arg8[%c0_15, %c0_16] : memref<8x128xf32, #tpu.memory_space<vmem>>, vector<8x128xf32>
    tpu.vector_store %arg8[%c0_15, %c0_16], %17 {strides = array<i32>} : memref<8x128xf32, #tpu.memory_space<vmem>>, vector<8x128xf32>,
    return
  }
  func.func @transform_0(%arg0: i32) -> (i32, i32) {
    %c0_i32 = arith.constant 0 : i32
    %c0_i32_0 = arith.constant 0 : i32
    return %arg0, %c0_i32 : i32, i32
  }
  func.func @transform_1(%arg0: i32) -> (i32, i32) {
    %c0_i32 = arith.constant 0 : i32
    %c0_i32_0 = arith.constant 0 : i32
    %c0_i32_1 = arith.constant 0 : i32
    return %c0_i32, %c0_i32_0 : i32, i32
  }
  func.func @transform_2(%arg0: i32) -> (i32, i32) {
    %c0_i32 = arith.constant 0 : i32
    %c0_i32_0 = arith.constant 0 : i32
    %c0_i32_1 = arith.constant 0 : i32
    return %c0_i32, %c0_i32_0 : i32, i32
  }
  func.func @transform_3(%arg0: i32) -> (i32, i32) {
    %c0_i32 = arith.constant 0 : i32
    %c0_i32_0 = arith.constant 0 : i32
    %c0_i32_1 = arith.constant 0 : i32
    return %c0_i32, %c0_i32_0 : i32, i32
  }
  func.func @transform_4(%arg0: i32) -> (i32, i32) {
    %c0_i32 = arith.constant 0 : i32
    %c0_i32_0 = arith.constant 0 : i32
    %c0_i32_1 = arith.constant 0 : i32
    return %c0_i32, %c0_i32_0 : i32, i32
  }
  func.func @transform_5(%arg0: i32) -> (i32, i32) {
    %c0_i32 = arith.constant 0 : i32
    %c0_i32_0 = arith.constant 0 : i32
    %c0_i32_1 = arith.constant 0 : i32
    return %c0_i32, %c0_i32_0 : i32, i32
  }
  func.func @transform_6(%arg0: i32) -> (i32, i32) {
    %c0_i32 = arith.constant 0 : i32
    %c0_i32_0 = arith.constant 0 : i32
    %c0_i32_1 = arith.constant 0 : i32
    return %c0_i32, %c0_i32_0 : i32, i32
  }
  func.func @transform_7(%arg0: i32) -> (i32, i32) {
    %c0_i32 = arith.constant 0 : i32
    %c0_i32_0 = arith.constant 0 : i32
    return %arg0, %c0_i32 : i32, i32
  }
}

</mosaic_0001>

<llo_original>
// kernel: qnetwork_forward.1
$region0: #{qnetwork_forward.1}
  #allocation0 [shape = 'u32[]', space=smem, size = 0x4, offset = 0x4, fixed_abs, tag = 'smem constant byte address 0x4 - core index']
  #allocation1 [shape = 'u32[72,128]{1,0:T(1,128)}', space=vmem, size = 0x9000, scoped, tag = 'internal scratch']
  %s0 = inlined_call_operand.vmem [shape: f32[8,4], index: 0, kind: input, shape index: {}]
  %s1 = inlined_call_operand.vmem [shape: f32[4,128], index: 1, kind: input, shape index: {}]
  %s2 = inlined_call_operand.vmem [shape: f32[1,128], index: 2, kind: input, shape index: {}]
  %s3 = inlined_call_operand.vmem [shape: f32[128,128], index: 3, kind: input, shape index: {}]
  %s4 = inlined_call_operand.vmem [shape: f32[1,128], index: 4, kind: input, shape index: {}]
  %s5 = inlined_call_operand.vmem [shape: f32[128,128], index: 5, kind: input, shape index: {}]
  %s6 = inlined_call_operand.vmem [shape: f32[1,128], index: 6, kind: input, shape index: {}]
  %s7 = inlined_call_operand.vmem [shape: f32[8,128], index: 7, kind: output, shape index: {}]
  %s8 = sld [smem:[#allocation0]]
  $region38: #{qnetwork_forward.1} parent=0
    _
  %s10 = ssub.s32 1, %s8
  %s11 = scalar_select 0, %s10, %s8
  // Predicated region
  $region2: #{qnetwork_forward.1} parent=0 // pred_check
    _
  $region3: #{qnetwork_forward.1} parent=0 // pred_check_branch
    %13 = sbr.rel (0) target = $region5
  $region4: #{qnetwork_forward.1} parent=0 // pred_region
    _
  $region5: #{qnetwork_forward.1} parent=0 // pred_fallthru
    _
  // Predicated region
  $region6: #{qnetwork_forward.1} parent=0 // pred_check
    _
  $region7: #{qnetwork_forward.1} parent=0 // pred_check_branch
    %15 = sbr.rel (0) target = $region9
  $region8: #{qnetwork_forward.1} parent=0 // pred_region
    _
  $region9: #{qnetwork_forward.1} parent=0 // pred_fallthru
    _
  // Predicated region
  $region10: #{qnetwork_forward.1} parent=0 // pred_check
    _
  $region11: #{qnetwork_forward.1} parent=0 // pred_check_branch
    %17 = sbr.rel (0) target = $region13
  $region12: #{qnetwork_forward.1} parent=0 // pred_region
    _
  $region13: #{qnetwork_forward.1} parent=0 // pred_fallthru
    _
  // Predicated region
  $region14: #{qnetwork_forward.1} parent=0 // pred_check
    _
  $region15: #{qnetwork_forward.1} parent=0 // pred_check_branch
    %19 = sbr.rel (0) target = $region17
  $region16: #{qnetwork_forward.1} parent=0 // pred_region
    _
  $region17: #{qnetwork_forward.1} parent=0 // pred_fallthru
    _
  // Predicated region
  $region18: #{qnetwork_forward.1} parent=0 // pred_check
    _
  $region19: #{qnetwork_forward.1} parent=0 // pred_check_branch
    %21 = sbr.rel (0) target = $region21
  $region20: #{qnetwork_forward.1} parent=0 // pred_region
    _
  $region21: #{qnetwork_forward.1} parent=0 // pred_fallthru
    _
  // Predicated region
  $region22: #{qnetwork_forward.1} parent=0 // pred_check
    _
  $region23: #{qnetwork_forward.1} parent=0 // pred_check_branch
    %23 = sbr.rel (0) target = $region25
  $region24: #{qnetwork_forward.1} parent=0 // pred_region
    _
  $region25: #{qnetwork_forward.1} parent=0 // pred_fallthru
    _
  // Predicated region
  $region26: #{qnetwork_forward.1} parent=0 // pred_check
    _
  $region27: #{qnetwork_forward.1} parent=0 // pred_check_branch
    %25 = sbr.rel (0) target = $region29
  $region28: #{qnetwork_forward.1} parent=0 // pred_region
    _
  $region29: #{qnetwork_forward.1} parent=0 // pred_fallthru
    _
  %v26 = vld [vmem:[%s0] sm:$0xff]
  %v27 = vld [vmem:[%s1] sm:$0xf]
  %v28 = vld [vmem:[%s2] sm:$0x1]
  %v30 = vperm.slane %v28, 0
  %vm32 = vcmask 31744
  %v34 = vsel %vm32, %v26, 0
  %vm36 = vcmask 1043456
  %v38 = vsel %vm36, %v27, 0
  %40 = vmatpush.msra.mxu0 0.0
  %41 = vmatpush.msra.mxu0 0.0
  %42 = vmatpush.msra.mxu0 0.0
  %43 = vmatpush.msra.mxu0 0.0
  %44 = vmatpush.msra.mxu0 0.0
  %45 = vmatpush.msra.mxu0 0.0
  %46 = vmatpush.msra.mxu0 0.0
  %47 = vmatpush.msra.mxu0 0.0
  %48 = vmatpush.msra.mxu0 0.0
  %49 = vmatpush.msra.mxu0 0.0
  %50 = vmatpush.msra.mxu0 0.0
  %51 = vmatpush.msra.mxu0 0.0
  %52 = vmatpush.msra.mxu0 0.0
  %53 = vmatpush.msra.mxu0 0.0
  %54 = vmatpush.msra.mxu0 0.0
  %55 = vmatpush.msra.mxu0 %v38
  %56 = vmatmul.f32.gmra.mxu0 %v34
  %v57 = vpop.f32.mrf.mxu0
  %v58 = vadd.f32 %v30, %v57
  %59 = vdwg.mxu0
  %v60 = vtanh.pop %v58
  %v61 = vld [vmem:[%s3] sm:$0xff]
  %v62 = vld [vmem:[%s3 + $0x8] sm:$0xff]
  %v63 = vld [vmem:[%s3 + $0x10] sm:$0xff]
  %v64 = vld [vmem:[%s3 + $0x18] sm:$0xff]
  %v65 = vld [vmem:[%s3 + $0x20] sm:$0xff]
  %v66 = vld [vmem:[%s3 + $0x28] sm:$0xff]
  %v67 = vld [vmem:[%s3 + $0x30] sm:$0xff]
  %v68 = vld [vmem:[%s3 + $0x38] sm:$0xff]
  %v69 = vld [vmem:[%s3 + $0x40] sm:$0xff]
  %v70 = vld [vmem:[%s3 + $0x48] sm:$0xff]
  %v71 = vld [vmem:[%s3 + $0x50] sm:$0xff]
  %v72 = vld [vmem:[%s3 + $0x58] sm:$0xff]
  %v73 = vld [vmem:[%s3 + $0x60] sm:$0xff]
  %v74 = vld [vmem:[%s3 + $0x68] sm:$0xff]
  %v75 = vld [vmem:[%s3 + $0x70] sm:$0xff]
  %v76 = vld [vmem:[%s3 + $0x78] sm:$0xff]
  %v77 = vld [vmem:[%s4] sm:$0x1]
  %v79 = vperm.slane %v77, 0
  %81 = vmatpush.msra.mxu0 %v76
  %82 = vmatpush.msra.mxu0 %v75
  %83 = vmatpush.msra.mxu0 %v74
  %84 = vmatpush.msra.mxu0 %v73
  %85 = vmatpush.msra.mxu0 %v72
  %86 = vmatpush.msra.mxu0 %v71
  %87 = vmatpush.msra.mxu0 %v70
  %88 = vmatpush.msra.mxu0 %v69
  %89 = vmatpush.msra.mxu0 %v68
  %90 = vmatpush.msra.mxu0 %v67
  %91 = vmatpush.msra.mxu0 %v66
  %92 = vmatpush.msra.mxu0 %v65
  %93 = vmatpush.msra.mxu0 %v64
  %94 = vmatpush.msra.mxu0 %v63
  %95 = vmatpush.msra.mxu0 %v62
  %96 = vmatpush.msra.mxu0 %v61
  %97 = vmatmul.f32.gmra.mxu0 %v60
  %v98 = vpop.f32.mrf.mxu0
  %v99 = vadd.f32 %v79, %v98
  %100 = vdwg.mxu0
  %v101 = vtanh.pop %v99
  %v102 = vld [vmem:[%s5] sm:$0xff]
  %v103 = vld [vmem:[%s5 + $0x8] sm:$0xff]
  %v104 = vld [vmem:[%s5 + $0x10] sm:$0xff]
  %v105 = vld [vmem:[%s5 + $0x18] sm:$0xff]
  %v106 = vld [vmem:[%s5 + $0x20] sm:$0xff]
  %v107 = vld [vmem:[%s5 + $0x28] sm:$0xff]
  %v108 = vld [vmem:[%s5 + $0x30] sm:$0xff]
  %v109 = vld [vmem:[%s5 + $0x38] sm:$0xff]
  %v110 = vld [vmem:[%s5 + $0x40] sm:$0xff]
  %v111 = vld [vmem:[%s5 + $0x48] sm:$0xff]
  %v112 = vld [vmem:[%s5 + $0x50] sm:$0xff]
  %v113 = vld [vmem:[%s5 + $0x58] sm:$0xff]
  %v114 = vld [vmem:[%s5 + $0x60] sm:$0xff]
  %v115 = vld [vmem:[%s5 + $0x68] sm:$0xff]
  %v116 = vld [vmem:[%s5 + $0x70] sm:$0xff]
  %v117 = vld [vmem:[%s5 + $0x78] sm:$0xff]
  %v118 = vld [vmem:[%s6] sm:$0x1]
  %v120 = vperm.slane %v118, 0
  %122 = vmatpush.msra.mxu0 %v117
  %123 = vmatpush.msra.mxu0 %v116
  %124 = vmatpush.msra.mxu0 %v115
  %125 = vmatpush.msra.mxu0 %v114
  %126 = vmatpush.msra.mxu0 %v113
  %127 = vmatpush.msra.mxu0 %v112
  %128 = vmatpush.msra.mxu0 %v111
  %129 = vmatpush.msra.mxu0 %v110
  %130 = vmatpush.msra.mxu0 %v109
  %131 = vmatpush.msra.mxu0 %v108
  %132 = vmatpush.msra.mxu0 %v107
  %133 = vmatpush.msra.mxu0 %v106
  %134 = vmatpush.msra.mxu0 %v105
  %135 = vmatpush.msra.mxu0 %v104
  %136 = vmatpush.msra.mxu0 %v103
  %137 = vmatpush.msra.mxu0 %v102
  %138 = vmatmul.f32.gmra.mxu0 %v101
  %v139 = vpop.f32.mrf.mxu0
  %v140 = vadd.f32 %v120, %v139
  %141 = vdwg.mxu0
  %142 = vst [vmem:[%s7] sm:$0xff] %v140
  // Predicated region
  $region30: #{qnetwork_forward.1} parent=0 // pred_check
    _
  $region31: #{qnetwork_forward.1} parent=0 // pred_check_branch
    %144 = sbr.rel (0) target = $region33
  $region32: #{qnetwork_forward.1} parent=0 // pred_region
    _
  $region33: #{qnetwork_forward.1} parent=0 // pred_fallthru
    _
  // Predicated region
  $region34: #{qnetwork_forward.1} parent=0 // pred_check
    _
  $region35: #{qnetwork_forward.1} parent=0 // pred_check_branch
    %146 = sbr.rel (0) target = $region37
  $region36: #{qnetwork_forward.1} parent=0 // pred_region
    _
  $region37: #{qnetwork_forward.1} parent=0 // pred_fallthru
    _

</llo_original>
